<compile_context>
chip_gen: v5e
topology: v5e:2x2
jax: 0.10.0
libtpu: 0.0.40
codegen_flags: <defaults>
</compile_context>

<pallas_src>
import jax
import jax.numpy as jnp
from jax import lax
from jax.experimental import pallas as pl
from jax.experimental.pallas import tpu as pltpu

# ---- "config" (small, synthetic) -------------------------------------------
VOCAB_SIZE = 100
VOCAB_PAD = 128                 # vocab rows padded with zeros -> one-hot K = 128
EMBED_SIZE = 32
PAD_IDX = 0
FEATURE_SIZE = 8
WINDOW_SIZES = (2, 3, 4)
MAX_WS = max(WINDOW_SIZES)      # 4  -> packed conv K = 4 * E = 128
SEQ_LEN = 16
BATCH = 2
FC_OUT = 16
NUM_CLASSES = 2
LEAKY_SLOPE = 0.01              # nn.LeakyReLU default

N_TOWERS = len(WINDOW_SIZES)
CONV_OUT = N_TOWERS * FEATURE_SIZE      # 24
ROWS = 2 * BATCH * SEQ_LEN              # 64: both Siamese branches, flattened


def siamcnn_kernel(idx_ref, emb_ref, wconv_ref, bconv_ref, mask_ref,
                   fcw_ref, fcb_ref, clfw_ref, clfb_ref, out_ref):
    """Entire Siamese forward (both branches fused) in one pass."""
    f32 = jnp.float32

    # ---- embedding lookup as a one-hot x table matmul on the MXU -----------
    idx = idx_ref[...]                                              # (R, 1) i32
    vocab_iota = lax.broadcasted_iota(jnp.int32, (ROWS, VOCAB_PAD), 1)
    onehot = (vocab_iota == idx).astype(f32)                        # (R, 128)
    embed = jnp.dot(onehot, emb_ref[...],
                    preferred_element_type=f32)                     # (R, E)

    # ---- build ws=4 windows once via XLU sublane rotates --------------------
    # row r of `windows` = [embed[r], embed[r+1], embed[r+2], embed[r+3]]
    # (circular; wrapped rows only hit positions the mean-pool mask zeroes).
    shifted = [embed] + [pltpu.roll(embed, ROWS - dt, 0)
                         for dt in range(1, MAX_WS)]
    windows = jnp.concatenate(shifted, axis=1)                      # (R, 4E=128)

    # ---- all three conv towers in ONE matmul (block-packed weight) ----------
    conv = (jnp.dot(windows, wconv_ref[...], preferred_element_type=f32)
            + bconv_ref[...])                                       # (R, 3F)
    act = jnp.where(conv > 0, conv, LEAKY_SLOPE * conv)             # LeakyReLU
    act = act.reshape(2 * BATCH, SEQ_LEN, CONV_OUT)
    # AdaptiveAvgPool2d(1): per-tower masked mean (mask = 1/t on valid rows).
    pooled = jnp.sum(act * mask_ref[...], axis=1)                   # (2B, 3F)

    # ---- shared fc for both Siamese branches in one matmul ------------------
    fc_out = (jnp.dot(pooled, fcw_ref[...], preferred_element_type=f32)
              + fcb_ref[...])                                       # (2B, 16)
    o1 = fc_out[:BATCH]
    o2 = fc_out[BATCH:]

    # ---- cross layer + classifier -------------------------------------------
    cross = jnp.concatenate([o1, o2, jnp.abs(o1 - o2), o1 * o2], axis=1)  # (B,64)
    out_ref[...] = (jnp.dot(cross, clfw_ref[...], preferred_element_type=f32)
                    + clfb_ref[...])                                # (B, 2)


def siamcnn_forward(x1, x2, params):
    # Only trivial glue stays outside the kernel: stack both branches' token
    # ids (256 bytes) so one kernel pass covers the whole Siamese forward.
    idx = jnp.concatenate([x1, x2], axis=0).reshape(ROWS, 1).astype(jnp.int32)

    args = (idx, params["emb"], params["wconv"], params["bconv"], params["mask"],
            params["fcw"], params["fcb"], params["clfw"], params["clfb"])

    flops = (2 * ROWS * VOCAB_PAD * EMBED_SIZE              # one-hot embedding
             + 2 * ROWS * MAX_WS * EMBED_SIZE * CONV_OUT    # packed conv
             + 2 * (2 * BATCH) * CONV_OUT * FC_OUT          # fc
             + 2 * BATCH * 4 * FC_OUT * NUM_CLASSES)        # classifier
    bytes_accessed = (sum(int(a.size) * a.dtype.itemsize for a in args)
                      + BATCH * NUM_CLASSES * 4)

    vmem = pltpu.MemorySpace.VMEM
    return pl.pallas_call(
        siamcnn_kernel,
        out_shape=jax.ShapeDtypeStruct((BATCH, NUM_CLASSES), jnp.float32),
        in_specs=[pl.BlockSpec(memory_space=vmem) for _ in args],
        out_specs=pl.BlockSpec(memory_space=vmem),
        cost_estimate=pl.CostEstimate(flops=int(flops), transcendentals=0,
                                      bytes_accessed=int(bytes_accessed)),
    )(*args)


def init_params(key):
    ks = jax.random.split(key, 10)
    scale = 0.1

    # Embedding table, padding_idx row zero, padded to 128 rows (zeros).
    emb = scale * jax.random.normal(ks[0], (VOCAB_SIZE, EMBED_SIZE), jnp.float32)
    emb = emb.at[PAD_IDX].set(0.0)
    emb_pad = jnp.zeros((VOCAB_PAD, EMBED_SIZE), jnp.float32).at[:VOCAB_SIZE].set(emb)

    # Conv weights in PyTorch's (dt, e) flattening, block-packed into one
    # (4E, 3F) matrix: tower i lives in columns [i*F, (i+1)*F), rows >= ws*E = 0.
    wconv = jnp.zeros((MAX_WS * EMBED_SIZE, CONV_OUT), jnp.float32)
    bconv_parts = []
    for i, ws in enumerate(WINDOW_SIZES):
        w = scale * jax.random.normal(ks[1 + i], (ws * EMBED_SIZE, FEATURE_SIZE),
                                      jnp.float32)
        b = scale * jax.random.normal(ks[4 + i], (1, FEATURE_SIZE), jnp.float32)
        wconv = wconv.at[:ws * EMBED_SIZE,
                         i * FEATURE_SIZE:(i + 1) * FEATURE_SIZE].set(w)
        bconv_parts.append(b)
    bconv = jnp.concatenate(bconv_parts, axis=1)                    # (1, 3F)

    # Masked-mean weights: 1/t_ws on each tower's valid positions, else 0.
    pos = jnp.arange(SEQ_LEN, dtype=jnp.float32)[:, None]           # (L, 1)
    mask_cols = []
    for ws in WINDOW_SIZES:
        t = SEQ_LEN - ws + 1
        col = jnp.where(pos < t, 1.0 / t, 0.0)
        mask_cols.append(jnp.tile(col, (1, FEATURE_SIZE)))
    mask = jnp.concatenate(mask_cols, axis=1)                       # (L, 3F)

    fcw = scale * jax.random.normal(ks[7], (CONV_OUT, FC_OUT), jnp.float32)
    fcb = scale * jax.random.normal(ks[8], (1, FC_OUT), jnp.float32)
    kc1, kc2 = jax.random.split(ks[9])
    clfw = scale * jax.random.normal(kc1, (4 * FC_OUT, NUM_CLASSES), jnp.float32)
    clfb = scale * jax.random.normal(kc2, (1, NUM_CLASSES), jnp.float32)

    return dict(emb=emb_pad, wconv=wconv, bconv=bconv, mask=mask,
                fcw=fcw, fcb=fcb, clfw=clfw, clfb=clfb)


if __name__ == "__main__":
    root = jax.random.PRNGKey(0)
    kp, kx1, kx2 = jax.random.split(root, 3)

    params = init_params(kp)
    x1 = jax.random.randint(kx1, (BATCH, SEQ_LEN), 0, VOCAB_SIZE, dtype=jnp.int32)
    x2 = jax.random.randint(kx2, (BATCH, SEQ_LEN), 0, VOCAB_SIZE, dtype=jnp.int32)

    out = jax.jit(siamcnn_forward)(x1, x2, params)
    out = jax.block_until_ready(out)
    assert out.shape == (BATCH, NUM_CLASSES) and out.dtype == jnp.float32
    print("KERNEL_OK")
</pallas_src>

<mosaic_0001>
module attributes {stable_mosaic.version = 11 : i64} {
  func.func @siamcnn_kernel(%arg0: memref<64x1xi32, #tpu.memory_space<vmem>>, %arg1: memref<128x32xf32, #tpu.memory_space<vmem>>, %arg2: memref<128x24xf32, #tpu.memory_space<vmem>>, %arg3: memref<1x24xf32, #tpu.memory_space<vmem>>, %arg4: memref<16x24xf32, #tpu.memory_space<vmem>>, %arg5: memref<24x16xf32, #tpu.memory_space<vmem>>, %arg6: memref<1x16xf32, #tpu.memory_space<vmem>>, %arg7: memref<64x2xf32, #tpu.memory_space<vmem>>, %arg8: memref<1x2xf32, #tpu.memory_space<vmem>>, %arg9: memref<2x2xf32, #tpu.memory_space<vmem>>) attributes {dimension_semantics = [], scalar_prefetch = 0 : i64, scratch_operands = 0 : i64, tpu.core_type = #tpu.core_type<tc>} {
    %c0 = arith.constant 0 : index
    %c0_0 = arith.constant 0 : index
    %0 = vector.load %arg0[%c0, %c0_0] : memref<64x1xi32, #tpu.memory_space<vmem>>, vector<64x1xi32>
    %1 = tpu.iota {dimensions = array<i32: 1>} : vector<64x128xi32>
    %2 = vector.broadcast %0 : vector<64x1xi32> to vector<64x128xi32>
    %3 = arith.cmpi eq, %1, %2 : vector<64x128xi32>
    %4 = arith.extui %3 : vector<64x128xi1> to vector<64x128xi32>
    %5 = arith.sitofp %4 : vector<64x128xi32> to vector<64x128xf32>
    %c0_1 = arith.constant 0 : index
    %c0_2 = arith.constant 0 : index
    %6 = vector.load %arg1[%c0_1, %c0_2] : memref<128x32xf32, #tpu.memory_space<vmem>>, vector<128x32xf32>
    %cst = arith.constant dense<0.000000e+00> : vector<64x32xf32>
    %7 = tpu.matmul %5, %6, %cst {dimension_numbers = #tpu.dot_dimension_numbers<[1], [0], [0], [1], [0, 0, 1, 1], [], []>} : vector<64x128xf32>, vector<128x32xf32>, vector<64x32xf32> -> vector<64x32xf32>
    %c63_i32 = arith.constant 63 : i32
    %8 = tpu.dynamic_rotate %7 by %c63_i32 dim 0 : vector<64x32xf32>, i32 -> vector<64x32xf32>
    %c62_i32 = arith.constant 62 : i32
    %9 = tpu.dynamic_rotate %7 by %c62_i32 dim 0 : vector<64x32xf32>, i32 -> vector<64x32xf32>
    %c61_i32 = arith.constant 61 : i32
    %10 = tpu.dynamic_rotate %7 by %c61_i32 dim 0 : vector<64x32xf32>, i32 -> vector<64x32xf32>
    %11 = tpu.concatenate %7, %8, %9, %10 in 1 : vector<64x32xf32>, vector<64x32xf32>, vector<64x32xf32>, vector<64x32xf32> -> vector<64x128xf32>
    %c0_3 = arith.constant 0 : index
    %c0_4 = arith.constant 0 : index
    %12 = vector.load %arg2[%c0_3, %c0_4] : memref<128x24xf32, #tpu.memory_space<vmem>>, vector<128x24xf32>
    %cst_5 = arith.constant dense<0.000000e+00> : vector<64x24xf32>
    %13 = tpu.matmul %11, %12, %cst_5 {dimension_numbers = #tpu.dot_dimension_numbers<[1], [0], [0], [1], [0, 0, 1, 1], [], []>} : vector<64x128xf32>, vector<128x24xf32>, vector<64x24xf32> -> vector<64x24xf32>
    %c0_6 = arith.constant 0 : index
    %c0_7 = arith.constant 0 : index
    %14 = vector.load %arg3[%c0_6, %c0_7] : memref<1x24xf32, #tpu.memory_space<vmem>>, vector<1x24xf32>
    %15 = vector.broadcast %14 : vector<1x24xf32> to vector<64x24xf32>
    %16 = arith.addf %13, %15 : vector<64x24xf32>
    %cst_8 = arith.constant 0.000000e+00 : f32
    %17 = vector.broadcast %cst_8 : f32 to vector<64x24xf32>
    %18 = arith.cmpf ogt, %16, %17 : vector<64x24xf32>
    %cst_9 = arith.constant 0.00999999977 : f32
    %19 = vector.broadcast %cst_9 : f32 to vector<64x24xf32>
    %20 = arith.mulf %19, %16 : vector<64x24xf32>
    %21 = arith.select %18, %16, %20 : vector<64x24xi1>, vector<64x24xf32>
    %22 = vector.shape_cast %21 : vector<64x24xf32> to vector<4x16x24xf32>
    %c0_10 = arith.constant 0 : index
    %c0_11 = arith.constant 0 : index
    %23 = vector.load %arg4[%c0_10, %c0_11] : memref<16x24xf32, #tpu.memory_space<vmem>>, vector<16x24xf32>
    %24 = vector.shape_cast %23 : vector<16x24xf32> to vector<16x24xf32>
    %25 = vector.shape_cast %24 : vector<16x24xf32> to vector<1x16x24xf32>
    %26 = vector.broadcast %25 : vector<1x16x24xf32> to vector<4x16x24xf32>
    %27 = arith.mulf %22, %26 : vector<4x16x24xf32>
    %cst_12 = arith.constant dense<0.000000e+00> : vector<4x24xf32>
    %28 = vector.multi_reduction <add>, %27, %cst_12 [1] : vector<4x16x24xf32> to vector<4x24xf32>
    %c0_13 = arith.constant 0 : index
    %c0_14 = arith.constant 0 : index
    %29 = vector.load %arg5[%c0_13, %c0_14] : memref<24x16xf32, #tpu.memory_space<vmem>>, vector<24x16xf32>
    %cst_15 = arith.constant dense<0.000000e+00> : vector<4x16xf32>
    %30 = tpu.matmul %28, %29, %cst_15 {dimension_numbers = #tpu.dot_dimension_numbers<[1], [0], [0], [1], [0, 0, 1, 1], [], []>} : vector<4x24xf32>, vector<24x16xf32>, vector<4x16xf32> -> vector<4x16xf32>
    %c0_16 = arith.constant 0 : index
    %c0_17 = arith.constant 0 : index
    %31 = vector.load %arg6[%c0_16, %c0_17] : memref<1x16xf32, #tpu.memory_space<vmem>>, vector<1x16xf32>
    %32 = vector.broadcast %31 : vector<1x16xf32> to vector<4x16xf32>
    %33 = arith.addf %30, %32 : vector<4x16xf32>
    %34 = vector.extract_strided_slice %33 {offsets = [0, 0], sizes = [2, 16], strides = [1, 1]} : vector<4x16xf32> to vector<2x16xf32>
    %35 = vector.extract_strided_slice %33 {offsets = [2, 0], sizes = [2, 16], strides = [1, 1]} : vector<4x16xf32> to vector<2x16xf32>
    %36 = arith.subf %34, %35 : vector<2x16xf32>
    %37 = math.absf %36 : vector<2x16xf32>
    %38 = arith.mulf %34, %35 : vector<2x16xf32>
    %39 = tpu.concatenate %34, %35, %37, %38 in 1 : vector<2x16xf32>, vector<2x16xf32>, vector<2x16xf32>, vector<2x16xf32> -> vector<2x64xf32>
    %c0_18 = arith.constant 0 : index
    %c0_19 = arith.constant 0 : index
    %40 = vector.load %arg7[%c0_18, %c0_19] : memref<64x2xf32, #tpu.memory_space<vmem>>, vector<64x2xf32>
    %cst_20 = arith.constant dense<0.000000e+00> : vector<2x2xf32>
    %41 = tpu.matmul %39, %40, %cst_20 {dimension_numbers = #tpu.dot_dimension_numbers<[1], [0], [0], [1], [0, 0, 1, 1], [], []>} : vector<2x64xf32>, vector<64x2xf32>, vector<2x2xf32> -> vector<2x2xf32>
    %c0_21 = arith.constant 0 : index
    %c0_22 = arith.constant 0 : index
    %42 = vector.load %arg8[%c0_21, %c0_22] : memref<1x2xf32, #tpu.memory_space<vmem>>, vector<1x2xf32>
    %43 = vector.broadcast %42 : vector<1x2xf32> to vector<2x2xf32>
    %44 = arith.addf %41, %43 : vector<2x2xf32>
    %c0_23 = arith.constant 0 : index
    %c0_24 = arith.constant 0 : index
    %45 = vector.load %arg9[%c0_23, %c0_24] : memref<2x2xf32, #tpu.memory_space<vmem>>, vector<2x2xf32>
    tpu.vector_store %arg9[%c0_23, %c0_24], %44 {strides = array<i32>} : memref<2x2xf32, #tpu.memory_space<vmem>>, vector<2x2xf32>,
    return
  }
}

</mosaic_0001>

<llo_original>
// kernel: siamcnn_forward.1
$region0: #{siamcnn_forward.1}
  #allocation0 [shape = 'u32[]', space=smem, size = 0x4, offset = 0x4, fixed_abs, tag = 'smem constant byte address 0x4 - core index']
  #allocation1 [shape = 'u32[72,128]{1,0:T(1,128)}', space=vmem, size = 0x9000, scoped, tag = 'internal scratch']
  %s0 = inlined_call_operand.vmem [shape: s32[64,1], index: 0, kind: input, shape index: {}]
  %s1 = inlined_call_operand.vmem [shape: f32[128,32], index: 1, kind: input, shape index: {}]
  %s2 = inlined_call_operand.vmem [shape: f32[128,24], index: 2, kind: input, shape index: {}]
  %s3 = inlined_call_operand.vmem [shape: f32[1,24], index: 3, kind: input, shape index: {}]
  %s4 = inlined_call_operand.vmem [shape: f32[16,24], index: 4, kind: input, shape index: {}]
  %s5 = inlined_call_operand.vmem [shape: f32[24,16], index: 5, kind: input, shape index: {}]
  %s6 = inlined_call_operand.vmem [shape: f32[1,16], index: 6, kind: input, shape index: {}]
  %s7 = inlined_call_operand.vmem [shape: f32[64,2], index: 7, kind: input, shape index: {}]
  %s8 = inlined_call_operand.vmem [shape: f32[1,2], index: 8, kind: input, shape index: {}]
  %s9 = inlined_call_operand.hbm [shape: f32[2,2], index: 9, kind: output, shape index: {}]
  %s10 = sld [smem:[#allocation0]]
  $region46: #{siamcnn_forward.1} parent=0
    _
  %s12 = ssub.s32 1, %s10
  %s13 = scalar_select 0, %s12, %s10
  $region1: #{siamcnn_forward.1} parent=0
    #allocation2 [shape = 'u8[1024]{0}', space=vmem, size = 0x400, scoped, tag = 'output window, operand 0, single buffered']
    #allocation3 [shape = 's32[1]{0}', space=sflag, size = 0x4, scoped, tag = 'scoped memory for siamcnn_forward.1']
    %14 = vsyncpa [#allocation3], 0
    // Predicated region
    $region2: #{siamcnn_forward.1} parent=1 // pred_check
      _
    $region3: #{siamcnn_forward.1} parent=1 // pred_check_branch
      %16 = sbr.rel (0) target = $region5
    $region4: #{siamcnn_forward.1} parent=1 // pred_region
      _
    $region5: #{siamcnn_forward.1} parent=1 // pred_fallthru
      _
    // Predicated region
    $region6: #{siamcnn_forward.1} parent=1 // pred_check
      _
    $region7: #{siamcnn_forward.1} parent=1 // pred_check_branch
      %18 = sbr.rel (0) target = $region9
    $region8: #{siamcnn_forward.1} parent=1 // pred_region
      _
    $region9: #{siamcnn_forward.1} parent=1 // pred_fallthru
      _
    // Predicated region
    $region10: #{siamcnn_forward.1} parent=1 // pred_check
      _
    $region11: #{siamcnn_forward.1} parent=1 // pred_check_branch
      %20 = sbr.rel (0) target = $region13
    $region12: #{siamcnn_forward.1} parent=1 // pred_region
      _
    $region13: #{siamcnn_forward.1} parent=1 // pred_fallthru
      _
    // Predicated region
    $region14: #{siamcnn_forward.1} parent=1 // pred_check
      _
    $region15: #{siamcnn_forward.1} parent=1 // pred_check_branch
      %22 = sbr.rel (0) target = $region17
    $region16: #{siamcnn_forward.1} parent=1 // pred_region
      _
    $region17: #{siamcnn_forward.1} parent=1 // pred_fallthru
      _
    // Predicated region
    $region18: #{siamcnn_forward.1} parent=1 // pred_check
      _
    $region19: #{siamcnn_forward.1} parent=1 // pred_check_branch
      %24 = sbr.rel (0) target = $region21
    $region20: #{siamcnn_forward.1} parent=1 // pred_region
      _
    $region21: #{siamcnn_forward.1} parent=1 // pred_fallthru
      _
    // Predicated region
    $region22: #{siamcnn_forward.1} parent=1 // pred_check
      _
    $region23: #{siamcnn_forward.1} parent=1 // pred_check_branch
      %26 = sbr.rel (0) target = $region25
    $region24: #{siamcnn_forward.1} parent=1 // pred_region
      _
    $region25: #{siamcnn_forward.1} parent=1 // pred_fallthru
      _
    // Predicated region
    $region26: #{siamcnn_forward.1} parent=1 // pred_check
      _
    $region27: #{siamcnn_forward.1} parent=1 // pred_check_branch
      %28 = sbr.rel (0) target = $region29
    $region28: #{siamcnn_forward.1} parent=1 // pred_region
      _
    $region29: #{siamcnn_forward.1} parent=1 // pred_fallthru
      _
    // Predicated region
    $region30: #{siamcnn_forward.1} parent=1 // pred_check
      _
    $region31: #{siamcnn_forward.1} parent=1 // pred_check_branch
      %30 = sbr.rel (0) target = $region33
    $region32: #{siamcnn_forward.1} parent=1 // pred_region
      _
    $region33: #{siamcnn_forward.1} parent=1 // pred_fallthru
      _
    // Predicated region
    $region34: #{siamcnn_forward.1} parent=1 // pred_check
      _
    $region35: #{siamcnn_forward.1} parent=1 // pred_check_branch
      %32 = sbr.rel (0) target = $region37
    $region36: #{siamcnn_forward.1} parent=1 // pred_region
      _
    $region37: #{siamcnn_forward.1} parent=1 // pred_fallthru
      _
    %v33 = vld [vmem:[%s0] sm:$0xff]
    %v34 = vld [vmem:[%s0 + $0x8] sm:$0xff]
    %v35 = vld [vmem:[%s0 + $0x10] sm:$0xff]
    %v36 = vld [vmem:[%s0 + $0x18] sm:$0xff]
    %v37 = vld [vmem:[%s0 + $0x20] sm:$0xff]
    %v38 = vld [vmem:[%s0 + $0x28] sm:$0xff]
    %v39 = vld [vmem:[%s0 + $0x30] sm:$0xff]
    %v40 = vld [vmem:[%s0 + $0x38] sm:$0xff]
    %v41 = vlaneseq
    %v42 = vand.u32 %v41, 127
    %43 = vset.pattern.permute.xlu0 0
    %44 = vperm.xlu0 %43, %v33
    %v45 = vpop.permute.xlu0 %44
    %46 = vset.pattern.permute.xlu0 0
    %47 = vperm.xlu0 %46, %v34
    %v48 = vpop.permute.xlu0 %47
    %49 = vset.pattern.permute.xlu0 0
    %50 = vperm.xlu0 %49, %v35
    %v51 = vpop.permute.xlu0 %50
    %52 = vset.pattern.permute.xlu0 0
    %53 = vperm.xlu0 %52, %v36
    %v54 = vpop.permute.xlu0 %53
    %55 = vset.pattern.permute.xlu0 0
    %56 = vperm.xlu0 %55, %v37
    %v57 = vpop.permute.xlu0 %56
    %58 = vset.pattern.permute.xlu0 0
    %59 = vperm.xlu0 %58, %v38
    %v60 = vpop.permute.xlu0 %59
    %61 = vset.pattern.permute.xlu0 0
    %62 = vperm.xlu0 %61, %v39
    %v63 = vpop.permute.xlu0 %62
    %64 = vset.pattern.permute.xlu0 0
    %65 = vperm.xlu0 %64, %v40
    %v66 = vpop.permute.xlu0 %65
    %vm67 = vcmp.eq.s32.totalorder %v42, %v45
    %vm68 = vcmp.eq.s32.totalorder %v42, %v48
    %vm69 = vcmp.eq.s32.totalorder %v42, %v51
    %vm70 = vcmp.eq.s32.totalorder %v42, %v54
    %vm71 = vcmp.eq.s32.totalorder %v42, %v57
    %vm72 = vcmp.eq.s32.totalorder %v42, %v60
    %vm73 = vcmp.eq.s32.totalorder %v42, %v63
    %vm74 = vcmp.eq.s32.totalorder %v42, %v66
    %v75 = vsel %vm67, 1, 0
    %v76 = vsel %vm68, 1, 0
    %v77 = vsel %vm69, 1, 0
    %v78 = vsel %vm70, 1, 0
    %v79 = vsel %vm71, 1, 0
    %v80 = vsel %vm72, 1, 0
    %v81 = vsel %vm73, 1, 0
    %v82 = vsel %vm74, 1, 0
    %v83 = vcvt.s32.f32 %v75
    %v84 = vcvt.s32.f32 %v76
    %v85 = vcvt.s32.f32 %v77
    %v86 = vcvt.s32.f32 %v78
    %v87 = vcvt.s32.f32 %v79
    %v88 = vcvt.s32.f32 %v80
    %v89 = vcvt.s32.f32 %v81
    %v90 = vcvt.s32.f32 %v82
    %v91 = vld [vmem:[%s1] sm:$0xff]
    %v92 = vld [vmem:[%s1 + $0x8] sm:$0xff]
    %v93 = vld [vmem:[%s1 + $0x10] sm:$0xff]
    %v94 = vld [vmem:[%s1 + $0x18] sm:$0xff]
    %v95 = vld [vmem:[%s1 + $0x20] sm:$0xff]
    %v96 = vld [vmem:[%s1 + $0x28] sm:$0xff]
    %v97 = vld [vmem:[%s1 + $0x30] sm:$0xff]
    %v98 = vld [vmem:[%s1 + $0x38] sm:$0xff]
    %v99 = vld [vmem:[%s1 + $0x40] sm:$0xff]
    %v100 = vld [vmem:[%s1 + $0x48] sm:$0xff]
    %v101 = vld [vmem:[%s1 + $0x50] sm:$0xff]
    %v102 = vld [vmem:[%s1 + $0x58] sm:$0xff]
    %v103 = vld [vmem:[%s1 + $0x60] sm:$0xff]
    %v104 = vld [vmem:[%s1 + $0x68] sm:$0xff]
    %v105 = vld [vmem:[%s1 + $0x70] sm:$0xff]
    %v106 = vld [vmem:[%s1 + $0x78] sm:$0xff]
    %107 = vmatpush.msra.mxu0 %v106
    %108 = vmatpush.msra.mxu0 %v105
    %109 = vmatpush.msra.mxu0 %v104
    %110 = vmatpush.msra.mxu0 %v103
    %111 = vmatpush.msra.mxu0 %v102
    %112 = vmatpush.msra.mxu0 %v101
    %113 = vmatpush.msra.mxu0 %v100
    %114 = vmatpush.msra.mxu0 %v99
    %115 = vmatpush.msra.mxu0 %v98
    %116 = vmatpush.msra.mxu0 %v97
    %117 = vmatpush.msra.mxu0 %v96
    %118 = vmatpush.msra.mxu0 %v95
    %119 = vmatpush.msra.mxu0 %v94
    %120 = vmatpush.msra.mxu0 %v93
    %121 = vmatpush.msra.mxu0 %v92
    %122 = vmatpush.msra.mxu0 %v91
    %123 = vmatmul.f32.gmra.mxu0 %v83
    %v124 = vpop.f32.mrf.mxu0
    %v125 = vadd.f32 0.0, %v124
    %126 = vmatmul.f32.gmra.mxu0 %v84
    %v127 = vpop.f32.mrf.mxu0
    %v128 = vadd.f32 0.0, %v127
    %129 = vmatmul.f32.gmra.mxu0 %v85
    %v130 = vpop.f32.mrf.mxu0
    %v131 = vadd.f32 0.0, %v130
    %132 = vmatmul.f32.gmra.mxu0 %v86
    %v133 = vpop.f32.mrf.mxu0
    %v134 = vadd.f32 0.0, %v133
    %135 = vmatmul.f32.gmra.mxu0 %v87
    %v136 = vpop.f32.mrf.mxu0
    %v137 = vadd.f32 0.0, %v136
    %138 = vmatmul.f32.gmra.mxu0 %v88
    %v139 = vpop.f32.mrf.mxu0
    %v140 = vadd.f32 0.0, %v139
    %141 = vmatmul.f32.gmra.mxu0 %v89
    %v142 = vpop.f32.mrf.mxu0
    %v143 = vadd.f32 0.0, %v142
    %144 = vmatmul.f32.gmra.mxu0 %v90
    %v145 = vpop.f32.mrf.mxu0
    %v146 = vadd.f32 0.0, %v145
    %147 = vdwg.mxu0
    %v148 = vrot.slane %v125, 1
    %v149 = vrot.slane %v128, 1
    %v150 = vrot.slane %v131, 1
    %v151 = vrot.slane %v134, 1
    %v152 = vrot.slane %v137, 1
    %v153 = vrot.slane %v140, 1
    %v154 = vrot.slane %v143, 1
    %v155 = vrot.slane %v146, 1
    %v156 = vlaneseq
    %v157 = vshrl.u32 %v156, 7
    %vm158 = vcmp.lt.s32.totalorder %v157, 7
    %v159 = vsel %vm158, %v154, %v155
    %v160 = vsel %vm158, %v153, %v154
    %v161 = vsel %vm158, %v152, %v153
    %v162 = vsel %vm158, %v151, %v152
    %v163 = vsel %vm158, %v150, %v151
    %v164 = vsel %vm158, %v149, %v150
    %v165 = vsel %vm158, %v148, %v149
    %v166 = vsel %vm158, %v155, %v148
    %v167 = vrot.slane %v125, 2
    %v168 = vrot.slane %v128, 2
    %v169 = vrot.slane %v131, 2
    %v170 = vrot.slane %v134, 2
    %v171 = vrot.slane %v137, 2
    %v172 = vrot.slane %v140, 2
    %v173 = vrot.slane %v143, 2
    %v174 = vrot.slane %v146, 2
    %vm175 = vcmp.lt.s32.totalorder %v157, 6
    %v176 = vsel %vm175, %v173, %v174
    %v177 = vsel %vm175, %v172, %v173
    %v178 = vsel %vm175, %v171, %v172
    %v179 = vsel %vm175, %v170, %v171
    %v180 = vsel %vm175, %v169, %v170
    %v181 = vsel %vm175, %v168, %v169
    %v182 = vsel %vm175, %v167, %v168
    %v183 = vsel %vm175, %v174, %v167
    %v184 = vrot.slane %v125, 3
    %v185 = vrot.slane %v128, 3
    %v186 = vrot.slane %v131, 3
    %v187 = vrot.slane %v134, 3
    %v188 = vrot.slane %v137, 3
    %v189 = vrot.slane %v140, 3
    %v190 = vrot.slane %v143, 3
    %v191 = vrot.slane %v146, 3
    %vm192 = vcmp.lt.s32.totalorder %v157, 5
    %v193 = vsel %vm192, %v190, %v191
    %v194 = vsel %vm192, %v189, %v190
    %v195 = vsel %vm192, %v188, %v189
    %v196 = vsel %vm192, %v187, %v188
    %v197 = vsel %vm192, %v186, %v187
    %v198 = vsel %vm192, %v185, %v186
    %v199 = vsel %vm192, %v184, %v185
    %v200 = vsel %vm192, %v191, %v184
    %209 = vrot.lane.b32.xlu0 %v165, 32
    %v210 = vpop.permute.xlu0 %209
    %211 = vrot.lane.b32.xlu0 %v164, 32
    %v212 = vpop.permute.xlu0 %211
    %213 = vrot.lane.b32.xlu0 %v163, 32
    %v214 = vpop.permute.xlu0 %213
    %215 = vrot.lane.b32.xlu0 %v162, 32
    %v216 = vpop.permute.xlu0 %215
    %217 = vrot.lane.b32.xlu0 %v161, 32
    %v218 = vpop.permute.xlu0 %217
    %219 = vrot.lane.b32.xlu0 %v160, 32
    %v220 = vpop.permute.xlu0 %219
    %221 = vrot.lane.b32.xlu0 %v159, 32
    %v222 = vpop.permute.xlu0 %221
    %223 = vrot.lane.b32.xlu0 %v166, 32
    %v224 = vpop.permute.xlu0 %223
    %241 = vrot.lane.b32.xlu0 %v182, 64
    %v242 = vpop.permute.xlu0 %241
    %243 = vrot.lane.b32.xlu0 %v181, 64
    %v244 = vpop.permute.xlu0 %243
    %245 = vrot.lane.b32.xlu0 %v180, 64
    %v246 = vpop.permute.xlu0 %245
    %247 = vrot.lane.b32.xlu0 %v179, 64
    %v248 = vpop.permute.xlu0 %247
    %249 = vrot.lane.b32.xlu0 %v178, 64
    %v250 = vpop.permute.xlu0 %249
    %251 = vrot.lane.b32.xlu0 %v177, 64
    %v252 = vpop.permute.xlu0 %251
    %253 = vrot.lane.b32.xlu0 %v176, 64
    %v254 = vpop.permute.xlu0 %253
    %255 = vrot.lane.b32.xlu0 %v183, 64
    %v256 = vpop.permute.xlu0 %255
    %273 = vrot.lane.b32.xlu0 %v199, 96
    %v274 = vpop.permute.xlu0 %273
    %275 = vrot.lane.b32.xlu0 %v198, 96
    %v276 = vpop.permute.xlu0 %275
    %277 = vrot.lane.b32.xlu0 %v197, 96
    %v278 = vpop.permute.xlu0 %277
    %279 = vrot.lane.b32.xlu0 %v196, 96
    %v280 = vpop.permute.xlu0 %279
    %281 = vrot.lane.b32.xlu0 %v195, 96
    %v282 = vpop.permute.xlu0 %281
    %283 = vrot.lane.b32.xlu0 %v194, 96
    %v284 = vpop.permute.xlu0 %283
    %285 = vrot.lane.b32.xlu0 %v193, 96
    %v286 = vpop.permute.xlu0 %285
    %287 = vrot.lane.b32.xlu0 %v200, 96
    %v288 = vpop.permute.xlu0 %287
    %vm297 = vcmask 261120
    %v298 = vsel %vm297, %v125, %v210
    %v299 = vsel %vm297, %v128, %v212
    %v300 = vsel %vm297, %v131, %v214
    %v301 = vsel %vm297, %v134, %v216
    %v302 = vsel %vm297, %v137, %v218
    %v303 = vsel %vm297, %v140, %v220
    %v304 = vsel %vm297, %v143, %v222
    %v305 = vsel %vm297, %v146, %v224
    %vm306 = vcmask 523264
    %v307 = vsel %vm306, %v298, %v242
    %v308 = vsel %vm306, %v299, %v244
    %v309 = vsel %vm306, %v300, %v246
    %v310 = vsel %vm306, %v301, %v248
    %v311 = vsel %vm306, %v302, %v250
    %v312 = vsel %vm306, %v303, %v252
    %v313 = vsel %vm306, %v304, %v254
    %v314 = vsel %vm306, %v305, %v256
    %vm315 = vcmask 785408
    %v316 = vsel %vm315, %v307, %v274
    %v317 = vsel %vm315, %v308, %v276
    %v318 = vsel %vm315, %v309, %v278
    %v319 = vsel %vm315, %v310, %v280
    %v320 = vsel %vm315, %v311, %v282
    %v321 = vsel %vm315, %v312, %v284
    %v322 = vsel %vm315, %v313, %v286
    %v323 = vsel %vm315, %v314, %v288
    %v324 = vld [vmem:[%s2] sm:$0xff]
    %v325 = vld [vmem:[%s2 + $0x8] sm:$0xff]
    %v326 = vld [vmem:[%s2 + $0x10] sm:$0xff]
    %v327 = vld [vmem:[%s2 + $0x18] sm:$0xff]
    %v328 = vld [vmem:[%s2 + $0x20] sm:$0xff]
    %v329 = vld [vmem:[%s2 + $0x28] sm:$0xff]
    %v330 = vld [vmem:[%s2 + $0x30] sm:$0xff]
    %v331 = vld [vmem:[%s2 + $0x38] sm:$0xff]
    %v332 = vld [vmem:[%s2 + $0x40] sm:$0xff]
    %v333 = vld [vmem:[%s2 + $0x48] sm:$0xff]
    %v334 = vld [vmem:[%s2 + $0x50] sm:$0xff]
    %v335 = vld [vmem:[%s2 + $0x58] sm:$0xff]
    %v336 = vld [vmem:[%s2 + $0x60] sm:$0xff]
    %v337 = vld [vmem:[%s2 + $0x68] sm:$0xff]
    %v338 = vld [vmem:[%s2 + $0x70] sm:$0xff]
    %v339 = vld [vmem:[%s2 + $0x78] sm:$0xff]
    %v340 = vld [vmem:[%s3] sm:$0x1]
    %v342 = vperm.slane %v340, 0
    %344 = vmatpush.msra.mxu0 %v339
    %345 = vmatpush.msra.mxu0 %v338
    %346 = vmatpush.msra.mxu0 %v337
    %347 = vmatpush.msra.mxu0 %v336
    %348 = vmatpush.msra.mxu0 %v335
    %349 = vmatpush.msra.mxu0 %v334
    %350 = vmatpush.msra.mxu0 %v333
    %351 = vmatpush.msra.mxu0 %v332
    %352 = vmatpush.msra.mxu0 %v331
    %353 = vmatpush.msra.mxu0 %v330
    %354 = vmatpush.msra.mxu0 %v329
    %355 = vmatpush.msra.mxu0 %v328
    %356 = vmatpush.msra.mxu0 %v327
    %357 = vmatpush.msra.mxu0 %v326
    %358 = vmatpush.msra.mxu0 %v325
    %359 = vmatpush.msra.mxu0 %v324
    %360 = vmatmul.f32.gmra.mxu0 %v316
    %v361 = vpop.f32.mrf.mxu0
    %v362 = vadd.f32 %v342, %v361
    %363 = vmatmul.f32.gmra.mxu0 %v317
    %v364 = vpop.f32.mrf.mxu0
    %v365 = vadd.f32 %v342, %v364
    %366 = vmatmul.f32.gmra.mxu0 %v318
    %v367 = vpop.f32.mrf.mxu0
    %v368 = vadd.f32 %v342, %v367
    %369 = vmatmul.f32.gmra.mxu0 %v319
    %v370 = vpop.f32.mrf.mxu0
    %v371 = vadd.f32 %v342, %v370
    %372 = vmatmul.f32.gmra.mxu0 %v320
    %v373 = vpop.f32.mrf.mxu0
    %v374 = vadd.f32 %v342, %v373
    %375 = vmatmul.f32.gmra.mxu0 %v321
    %v376 = vpop.f32.mrf.mxu0
    %v377 = vadd.f32 %v342, %v376
    %378 = vmatmul.f32.gmra.mxu0 %v322
    %v379 = vpop.f32.mrf.mxu0
    %v380 = vadd.f32 %v342, %v379
    %381 = vmatmul.f32.gmra.mxu0 %v323
    %v382 = vpop.f32.mrf.mxu0
    %v383 = vadd.f32 %v342, %v382
    %384 = vdwg.mxu0
    %vm385 = vcmp.gt.f32.partialorder %v362, 0.0
    %vm386 = vcmp.gt.f32.partialorder %v365, 0.0
    %vm387 = vcmp.gt.f32.partialorder %v368, 0.0
    %vm388 = vcmp.gt.f32.partialorder %v371, 0.0
    %vm389 = vcmp.gt.f32.partialorder %v374, 0.0
    %vm390 = vcmp.gt.f32.partialorder %v377, 0.0
    %vm391 = vcmp.gt.f32.partialorder %v380, 0.0
    %vm392 = vcmp.gt.f32.partialorder %v383, 0.0
    %v393 = vmul.f32 %v362, 0.01
    %v394 = vmul.f32 %v365, 0.01
    %v395 = vmul.f32 %v368, 0.01
    %v396 = vmul.f32 %v371, 0.01
    %v397 = vmul.f32 %v374, 0.01
    %v398 = vmul.f32 %v377, 0.01
    %v399 = vmul.f32 %v380, 0.01
    %v400 = vmul.f32 %v383, 0.01
    %v401 = vsel %vm385, %v362, %v393
    %v402 = vsel %vm386, %v365, %v394
    %v403 = vsel %vm387, %v368, %v395
    %v404 = vsel %vm388, %v371, %v396
    %v405 = vsel %vm389, %v374, %v397
    %v406 = vsel %vm390, %v377, %v398
    %v407 = vsel %vm391, %v380, %v399
    %v408 = vsel %vm392, %v383, %v400
    %v409 = vld [vmem:[%s4] sm:$0xff]
    %v410 = vld [vmem:[%s4 + $0x8] sm:$0xff]
    %v411 = vmul.f32 %v401, %v409
    %v412 = vmul.f32 %v402, %v410
    %v413 = vmul.f32 %v403, %v409
    %v414 = vmul.f32 %v404, %v410
    %v415 = vmul.f32 %v405, %v409
    %v416 = vmul.f32 %v406, %v410
    %v417 = vmul.f32 %v407, %v409
    %v418 = vmul.f32 %v408, %v410
    %vm419 = vcmask 195584
    %v420 = vsel %vm419, %v411, 0.0
    %v421 = vsel %vm419, %v412, 0.0
    %v422 = vadd.f32 %v420, %v421
    %v423 = vrot.slane %v422, 4
    %v424 = vadd.f32 %v422, %v423
    %v425 = vrot.slane %v424, 2
    %v426 = vadd.f32 %v424, %v425
    %v427 = vrot.slane %v426, 1
    %v428 = vadd.f32 %v426, %v427
    %v429 = vsel %vm419, %v413, 0.0
    %v430 = vsel %vm419, %v414, 0.0
    %v431 = vadd.f32 %v429, %v430
    %v432 = vrot.slane %v431, 4
    %v433 = vadd.f32 %v431, %v432
    %v434 = vrot.slane %v433, 2
    %v435 = vadd.f32 %v433, %v434
    %v436 = vrot.slane %v435, 1
    %v437 = vadd.f32 %v435, %v436
    %v438 = vsel %vm419, %v415, 0.0
    %v439 = vsel %vm419, %v416, 0.0
    %v440 = vadd.f32 %v438, %v439
    %v441 = vrot.slane %v440, 4
    %v442 = vadd.f32 %v440, %v441
    %v443 = vrot.slane %v442, 2
    %v444 = vadd.f32 %v442, %v443
    %v445 = vrot.slane %v444, 1
    %v446 = vadd.f32 %v444, %v445
    %v447 = vsel %vm419, %v417, 0.0
    %v448 = vsel %vm419, %v418, 0.0
    %v449 = vadd.f32 %v447, %v448
    %v450 = vrot.slane %v449, 4
    %v451 = vadd.f32 %v449, %v450
    %v452 = vrot.slane %v451, 2
    %v453 = vadd.f32 %v451, %v452
    %v454 = vrot.slane %v453, 1
    %v455 = vadd.f32 %v453, %v454
    %v456 = vld [vmem:[%s5] sm:$0xff]
    %v457 = vld [vmem:[%s5 + $0x8] sm:$0xff]
    %v458 = vld [vmem:[%s5 + $0x10] sm:$0xff]
    %v459 = vld [vmem:[%s6] sm:$0x1]
    %v461 = vperm.slane %v459, 0
    %vm467 = vcmask 1041409
    %v468 = vsel %vm467, %v437, %v428
    %vm469 = vcmask 1042434
    %v470 = vsel %vm469, %v446, %v468
    %vm471 = vcmask 1043459
    %v472 = vsel %vm471, %v455, %v470
    %v473 = vsel %vm419, %v472, 0
    %475 = vmatpush.msra.mxu0 0.0
    %476 = vmatpush.msra.mxu0 0.0
    %477 = vmatpush.msra.mxu0 0.0
    %478 = vmatpush.msra.mxu0 0.0
    %479 = vmatpush.msra.mxu0 0.0
    %480 = vmatpush.msra.mxu0 0.0
    %481 = vmatpush.msra.mxu0 0.0
    %482 = vmatpush.msra.mxu0 0.0
    %483 = vmatpush.msra.mxu0 0.0
    %484 = vmatpush.msra.mxu0 0.0
    %485 = vmatpush.msra.mxu0 0.0
    %486 = vmatpush.msra.mxu0 0.0
    %487 = vmatpush.msra.mxu0 0.0
    %488 = vmatpush.msra.mxu0 %v458
    %489 = vmatpush.msra.mxu0 %v457
    %490 = vmatpush.msra.mxu0 %v456
    %491 = vmatmul.f32.gmra.mxu0 %v473
    %v492 = vpop.f32.mrf.mxu0
    %v493 = vadd.f32 %v461, %v492
    %494 = vdwg.mxu0
    %v496 = vrot.slane %v493, 2
    %v498 = vsub.f32 %v493, %v496
    %v499 = vand.u32 2147483647, %v498
    %v500 = vmul.f32 %v493, %v496
    %501 = vrot.lane.b32.xlu0 %v496, 16
    %v502 = vpop.permute.xlu0 %501
    %505 = vrot.lane.b32.xlu0 %v499, 32
    %v506 = vpop.permute.xlu0 %505
    %509 = vrot.lane.b32.xlu0 %v500, 48
    %v510 = vpop.permute.xlu0 %509
    %vm512 = vcmask 130048
    %v513 = vsel %vm512, %v493, %v502
    %v514 = vsel %vm297, %v513, %v506
    %vm515 = vcmask 392192
    %v516 = vsel %vm515, %v514, %v510
    %v517 = vld [vmem:[%s7] sm:$0xff]
    %v518 = vld [vmem:[%s7 + $0x8] sm:$0xff]
    %v519 = vld [vmem:[%s7 + $0x10] sm:$0xff]
    %v520 = vld [vmem:[%s7 + $0x18] sm:$0xff]
    %v521 = vld [vmem:[%s7 + $0x20] sm:$0xff]
    %v522 = vld [vmem:[%s7 + $0x28] sm:$0xff]
    %v523 = vld [vmem:[%s7 + $0x30] sm:$0xff]
    %v524 = vld [vmem:[%s7 + $0x38] sm:$0xff]
    %v525 = vld [vmem:[%s8] sm:$0x1]
    %v527 = vperm.slane %v525, 0
    %v530 = vsel %vm306, %v516, 0
    %532 = vmatpush.msra.mxu0 0.0
    %533 = vmatpush.msra.mxu0 0.0
    %534 = vmatpush.msra.mxu0 0.0
    %535 = vmatpush.msra.mxu0 0.0
    %536 = vmatpush.msra.mxu0 0.0
    %537 = vmatpush.msra.mxu0 0.0
    %538 = vmatpush.msra.mxu0 0.0
    %539 = vmatpush.msra.mxu0 0.0
    %540 = vmatpush.msra.mxu0 %v524
    %541 = vmatpush.msra.mxu0 %v523
    %542 = vmatpush.msra.mxu0 %v522
    %543 = vmatpush.msra.mxu0 %v521
    %544 = vmatpush.msra.mxu0 %v520
    %545 = vmatpush.msra.mxu0 %v519
    %546 = vmatpush.msra.mxu0 %v518
    %547 = vmatpush.msra.mxu0 %v517
    %548 = vmatmul.f32.gmra.mxu0 %v530
    %v549 = vpop.f32.mrf.mxu0
    %v550 = vadd.f32 %v527, %v549
    %551 = vdwg.mxu0
    %vm552 = vcmask 9216
    %553 = vst.msk [vmem:[#allocation2] sm:$0x3] %vm552, %v550
    // Predicated region
    $region38: #{siamcnn_forward.1} parent=1 // pred_check
      _
    $region39: #{siamcnn_forward.1} parent=1 // pred_check_branch
      %555 = sbr.rel (0) target = $region41
    $region40: #{siamcnn_forward.1} parent=1 // pred_region
      %557 = vsyncadd [#allocation3], 0
      %s559 = sshll.u32 [#allocation2], 4
      %s560 = int_to_ptr.vmem [resolvable:$true] %s559
      %s561 = sshll.u32 %s9, 4
      %s562 = int_to_ptr.hbm [resolvable:$true] %s561
      %564 = dma.vmem_to_hbm [thread:$0]  %s560, 32, %s562, [#allocation3]
    $region41: #{siamcnn_forward.1} parent=1 // pred_fallthru
      _
    // Predicated region
    $region42: #{siamcnn_forward.1} parent=1 // pred_check
      _
    $region43: #{siamcnn_forward.1} parent=1 // pred_check_branch
      %566 = sbr.rel (0) target = $region45
    $region44: #{siamcnn_forward.1} parent=1 // pred_region
      %568 = dma.done [#allocation3], 32
    $region45: #{siamcnn_forward.1} parent=1 // pred_fallthru
      _
    %569 = vsyncpa [#allocation3], 1

</llo_original>
